<compile_context>
chip_gen: v7x
topology: tpu7x:2x2x1
jax: 0.10.0
libtpu: 0.0.40
codegen_flags: <defaults>
</compile_context>

<pallas_src>
import functools
import math

import jax
import jax.numpy as jnp
from jax.experimental import pallas as pl
from jax.experimental.pallas import tpu as pltpu


def _round_up(x: int, m: int) -> int:
    return ((x + m - 1) // m) * m


def _cdiv(a: int, b: int) -> int:
    return -(-a // b)


def _vmem_capacity_bytes() -> int:
    # Preferred: ask the runtime.
    try:
        cap = int(pltpu.get_tpu_info().vmem_capacity_bytes)
        if cap > 0:
            return cap
    except Exception:
        pass
    # Generation-aware fallback so v5e/v6e keep their 128 MiB-derived tiles.
    try:
        kind = jax.devices()[0].device_kind.lower()
        if "v7" in kind:
            return 64 * 1024 * 1024
        if "v6" in kind or "v5" in kind or "v4" in kind:
            return 128 * 1024 * 1024
    except Exception:
        pass
    return 64 * 1024 * 1024  # conservative default


def _lora_kernel(x_ref, a_ref, b_ref, o_ref):
    # x_ref: [TM, in_p] (caller dtype), a_ref: [in_p, r] bf16,
    # b_ref: [r, out_p] bf16 (scale pre-folded), o_ref: [TM, out_p].
    x = x_ref[...].astype(jnp.bfloat16)  # no-op if caller already passes bf16
    xa = jnp.dot(x, a_ref[...], preferred_element_type=jnp.float32)
    y = jnp.dot(xa.astype(jnp.bfloat16), b_ref[...],
                preferred_element_type=jnp.float32)
    o_ref[...] = y.astype(o_ref.dtype)


def lora_linear(x, a_t, b_t, scale, *, max_tm=2048):
    """LoRA forward: ((x @ a_t) @ b_t) * scale.

    x:   [..., in_features]
    a_t: [in_features, r]    (= lora_A.weight.T)
    b_t: [r, out_features]   (= lora_B.weight.T)
    """
    in_features, r = a_t.shape
    r2, out_features = b_t.shape
    assert r == r2, "rank mismatch between A and B"
    assert x.shape[-1] == in_features

    lead = x.shape[:-1]
    m = int(math.prod(lead)) if lead else 1
    out_dtype = x.dtype
    x2d = x.reshape(m, in_features)

    # Lane-dense padding targets: last dims -> multiples of 128.
    in_p = _round_up(in_features, 128)
    out_p = _round_up(out_features, 128)

    x_bytes = x2d.dtype.itemsize
    o_bytes = jnp.dtype(out_dtype).itemsize

    # ---- Tile selection: honest per-row VMEM cost ----------------------------
    # Pipelined tiles (double-buffered) + in-kernel temporaries:
    #   bf16 x copy, f32 xa [TM, r] (+ its bf16 cast), f32 y result [TM, out_p].
    per_row = (
        2 * in_p * x_bytes          # x tile, double buffered
        + 2 * out_p * o_bytes       # y tile, double buffered
        + in_p * 2                  # bf16 copy of x
        + out_p * 4                 # f32 second-matmul result
        + r * (4 + 2)               # f32 xa + bf16 xa
    )
    w_bytes = in_p * r * 2 + r * out_p * 2     # bf16 weights (resident)
    capacity = _vmem_capacity_bytes()
    tile_budget = capacity // 2 - 2 * w_bytes  # weights kept double-buffered
    tm_cap = max(16, (min(max_tm, max(16, tile_budget // per_row)) // 16) * 16)

    # ---- Rebalance TM against M and guarantee enough grid steps --------------
    m_r = _round_up(max(m, 16), 16)
    min_steps = 1
    if m_r > 512:
        min_steps = 2
    if m_r > 2048:
        min_steps = 4
    n_steps = max(_cdiv(m_r, tm_cap), min_steps)
    tm = _round_up(_cdiv(m_r, n_steps), 16)    # <= tm_cap (tm_cap is mult of 16)
    m_p = n_steps * tm

    # ---- Prepare operands (skip pads in the aligned common case) -------------
    if (m_p != m) or (in_p != in_features):
        x_in = jnp.pad(x2d, ((0, m_p - m), (0, in_p - in_features)))
    else:
        x_in = x2d

    a_prep = a_t.astype(jnp.bfloat16)
    if in_p != in_features:
        a_prep = jnp.pad(a_prep, ((0, in_p - in_features), (0, 0)))

    # Fold alpha/r into B once at prep time (exact for power-of-two scales).
    b_prep = (b_t.astype(jnp.float32) * float(scale)).astype(jnp.bfloat16)
    if out_p != out_features:
        b_prep = jnp.pad(b_prep, ((0, 0), (0, out_p - out_features)))

    # ---- VMEM limit & scheduling hint -----------------------------------------
    needed = per_row * tm + 2 * w_bytes
    vmem_limit = int(min(capacity * 7 // 8,
                         max(32 * 1024 * 1024, needed + (8 << 20))))

    cost = pl.CostEstimate(
        flops=2 * m * r * (in_features + out_features),
        transcendentals=0,
        bytes_accessed=m * in_features * x_bytes
        + m * out_features * o_bytes
        + w_bytes,
    )

    y_pad = pl.pallas_call(
        _lora_kernel,
        out_shape=jax.ShapeDtypeStruct((m_p, out_p), out_dtype),
        grid=(m_p // tm,),
        in_specs=[
            pl.BlockSpec((tm, in_p), lambda i: (i, 0)),   # x: streamed over M
            pl.BlockSpec((in_p, r), lambda i: (0, 0)),    # A_t: VMEM-resident
            pl.BlockSpec((r, out_p), lambda i: (0, 0)),   # B_t (scaled): resident
        ],
        out_specs=pl.BlockSpec((tm, out_p), lambda i: (i, 0)),
        compiler_params=pltpu.CompilerParams(
            dimension_semantics=("parallel",),
            vmem_limit_bytes=vmem_limit,
        ),
        cost_estimate=cost,
    )(x_in, a_prep, b_prep)

    if (m_p != m) or (out_p != out_features):
        y2d = y_pad[:m, :out_features]
    else:
        y2d = y_pad
    return y2d.reshape(*lead, out_features)


if __name__ == "__main__":
    # LoRALinear config (defaults r=8, alpha=32), small demo shapes.
    in_features = 32
    out_features = 64
    r = 8
    alpha = 32
    scale = alpha / r  # 4.0 (power of two -> scale-folding is exact)

    key = jax.random.PRNGKey(0)
    kx, ka, kb = jax.random.split(key, 3)
    # PyTorch layouts: lora_A.weight (r, in), lora_B.weight (out, r).
    A = jax.random.normal(ka, (r, in_features), dtype=jnp.float32) * 0.02
    B = jax.random.normal(kb, (out_features, r), dtype=jnp.float32) * 0.02
    x = jax.random.normal(kx, (2, 8, in_features), dtype=jnp.float32)

    # Pre-transpose once at weight-prep time.
    A_t = A.T  # [in, r]
    B_t = B.T  # [r, out]

    y = lora_linear(x, A_t, B_t, scale)
    y = jax.block_until_ready(y)
    assert y.shape == (2, 8, out_features)

    # Reference 1: exact PyTorch-semantics f32 (loose tol: kernel uses bf16
    # MXU operands with f32 accumulation).
    y_ref_f32 = ((x @ A.T) @ B.T) * scale
    err_f32 = float(jnp.max(jnp.abs(y - y_ref_f32)))
    assert jnp.allclose(y, y_ref_f32, atol=2e-3, rtol=2e-2), err_f32

    # Reference 2: pure-JAX with matching bf16 operands / f32 accumulation and
    # the scale folded into B (same numerics as the kernel).
    xa_ref = jnp.dot(x.reshape(-1, in_features).astype(jnp.bfloat16),
                     A_t.astype(jnp.bfloat16),
                     preferred_element_type=jnp.float32)
    b_scaled = (B_t.astype(jnp.float32) * scale).astype(jnp.bfloat16)
    y_ref_bf = jnp.dot(xa_ref.astype(jnp.bfloat16), b_scaled,
                       preferred_element_type=jnp.float32)
    y_ref_bf = y_ref_bf.reshape(2, 8, out_features).astype(x.dtype)
    err_bf = float(jnp.max(jnp.abs(y - y_ref_bf)))
    assert jnp.allclose(y, y_ref_bf, atol=1e-4, rtol=1e-3), err_bf

    print("KERNEL_OK")
</pallas_src>

<mosaic_0001>
module attributes {stable_mosaic.version = 11 : i64} {
  func.func @_lora_kernel(%arg0: i32, %arg1: memref<16x128xf32, #tpu.memory_space<vmem>>, %arg2: memref<128x8xbf16, #tpu.memory_space<vmem>>, %arg3: memref<8x128xbf16, #tpu.memory_space<vmem>>, %arg4: memref<16x128xf32, #tpu.memory_space<vmem>>) attributes {dimension_semantics = [#tpu.dimension_semantics<parallel>], iteration_bounds = array<i64: 1>, scalar_prefetch = 0 : i64, scratch_operands = 0 : i64, tpu.core_type = #tpu.core_type<tc>, window_params = [{transform_indices = @transform_0, window_bounds = array<i64: 16, 128>}, {pipeline_mode = #tpu.pipeline_mode<synchronous>, transform_indices = @transform_1, window_bounds = array<i64: 128, 8>}, {pipeline_mode = #tpu.pipeline_mode<synchronous>, transform_indices = @transform_2, window_bounds = array<i64: 8, 128>}, {transform_indices = @transform_3, window_bounds = array<i64: 16, 128>}]} {
    %c0 = arith.constant 0 : index
    %c0_0 = arith.constant 0 : index
    %0 = vector.load %arg1[%c0, %c0_0] : memref<16x128xf32, #tpu.memory_space<vmem>>, vector<16x128xf32>
    %1 = arith.truncf %0 : vector<16x128xf32> to vector<16x128xbf16>
    %c0_1 = arith.constant 0 : index
    %c0_2 = arith.constant 0 : index
    %2 = vector.load %arg2[%c0_1, %c0_2] : memref<128x8xbf16, #tpu.memory_space<vmem>>, vector<128x8xbf16>
    %cst = arith.constant dense<0.000000e+00> : vector<16x8xf32>
    %3 = tpu.matmul %1, %2, %cst {dimension_numbers = #tpu.dot_dimension_numbers<[1], [0], [0], [1], [0, 0, 1, 1], [], []>} : vector<16x128xbf16>, vector<128x8xbf16>, vector<16x8xf32> -> vector<16x8xf32>
    %4 = arith.truncf %3 : vector<16x8xf32> to vector<16x8xbf16>
    %c0_3 = arith.constant 0 : index
    %c0_4 = arith.constant 0 : index
    %5 = vector.load %arg3[%c0_3, %c0_4] : memref<8x128xbf16, #tpu.memory_space<vmem>>, vector<8x128xbf16>
    %cst_5 = arith.constant dense<0.000000e+00> : vector<16x128xf32>
    %6 = tpu.matmul %4, %5, %cst_5 {dimension_numbers = #tpu.dot_dimension_numbers<[1], [0], [0], [1], [0, 0, 1, 1], [], []>} : vector<16x8xbf16>, vector<8x128xbf16>, vector<16x128xf32> -> vector<16x128xf32>
    %c0_6 = arith.constant 0 : index
    %c0_7 = arith.constant 0 : index
    %7 = vector.load %arg4[%c0_6, %c0_7] : memref<16x128xf32, #tpu.memory_space<vmem>>, vector<16x128xf32>
    tpu.vector_store %arg4[%c0_6, %c0_7], %6 {strides = array<i32>} : memref<16x128xf32, #tpu.memory_space<vmem>>, vector<16x128xf32>,
    return
  }
  func.func @transform_0(%arg0: i32) -> (i32, i32) {
    %c0_i32 = arith.constant 0 : i32
    %c0_i32_0 = arith.constant 0 : i32
    return %arg0, %c0_i32 : i32, i32
  }
  func.func @transform_1(%arg0: i32) -> (i32, i32) {
    %c0_i32 = arith.constant 0 : i32
    %c0_i32_0 = arith.constant 0 : i32
    %c0_i32_1 = arith.constant 0 : i32
    return %c0_i32, %c0_i32_0 : i32, i32
  }
  func.func @transform_2(%arg0: i32) -> (i32, i32) {
    %c0_i32 = arith.constant 0 : i32
    %c0_i32_0 = arith.constant 0 : i32
    %c0_i32_1 = arith.constant 0 : i32
    return %c0_i32, %c0_i32_0 : i32, i32
  }
  func.func @transform_3(%arg0: i32) -> (i32, i32) {
    %c0_i32 = arith.constant 0 : i32
    %c0_i32_0 = arith.constant 0 : i32
    return %arg0, %c0_i32 : i32, i32
  }
}

</mosaic_0001>

<llo_original>
// kernel: tpu_custom_call.1
$region0: #{tpu_custom_call.1}
  #allocation0 [shape = 'u32[]', space=smem, size = 0x4, offset = 0x4, fixed_abs, tag = 'smem constant byte address 0x4 - core index']
  #allocation1 [shape = 'u32[144,128]{1,0:T(1,128)}', space=vmem, size = 0x12000, scoped, tag = 'internal scratch']
  %s0 = inlined_call_operand.vmem [shape: f32[16,128], index: 0, kind: input, shape index: {}]
  %s1 = inlined_call_operand.vmem [shape: bf16[128,8], index: 1, kind: input, shape index: {}]
  %s2 = inlined_call_operand.vmem [shape: bf16[8,128], index: 2, kind: input, shape index: {}]
  %s3 = inlined_call_operand.hbm [shape: f32[16,128], index: 3, kind: output, shape index: {}]
  %s4 = sld [smem:[#allocation0]]
  $region22: #{tpu_custom_call.1} parent=0
    _
  %s6 = ssub.s32 1, %s4
  %s7 = scalar_select 0, %s6, %s4
  $region1: #{tpu_custom_call.1} parent=0
    #allocation2 [shape = 'u8[8192]{0}', space=vmem, size = 0x2000, scoped, tag = 'output window, operand 0, single buffered']
    #allocation3 [shape = 's32[1]{0}', space=sflag, size = 0x4, scoped, tag = 'scoped memory for tpu_custom_call.1']
    %8 = vsyncpa [#allocation3], 0
    // Predicated region
    $region2: #{tpu_custom_call.1} parent=1 // pred_check
      _
    $region3: #{tpu_custom_call.1} parent=1 // pred_check_branch
      %10 = sbr.rel (0) target = $region5
    $region4: #{tpu_custom_call.1} parent=1 // pred_region
      _
    $region5: #{tpu_custom_call.1} parent=1 // pred_fallthru
      _
    // Predicated region
    $region6: #{tpu_custom_call.1} parent=1 // pred_check
      _
    $region7: #{tpu_custom_call.1} parent=1 // pred_check_branch
      %12 = sbr.rel (0) target = $region9
    $region8: #{tpu_custom_call.1} parent=1 // pred_region
      _
    $region9: #{tpu_custom_call.1} parent=1 // pred_fallthru
      _
    // Predicated region
    $region10: #{tpu_custom_call.1} parent=1 // pred_check
      _
    $region11: #{tpu_custom_call.1} parent=1 // pred_check_branch
      %14 = sbr.rel (0) target = $region13
    $region12: #{tpu_custom_call.1} parent=1 // pred_region
      _
    $region13: #{tpu_custom_call.1} parent=1 // pred_fallthru
      _
    %v16 = vld [vmem:[%s0] sm:$0xff]
    %v17 = vld [vmem:[%s0 + $0x8] sm:$0xff]
    %v18 = vpack.c.bf16 %v17, %v16
    %v19 = vld [vmem:[%s1] sm:$0xf]
    %v20 = vld [vmem:[%s1 + $0x4] sm:$0xf]
    %v21 = vld [vmem:[%s1 + $0x8] sm:$0xf]
    %v22 = vld [vmem:[%s1 + $0xc] sm:$0xf]
    %v23 = vld [vmem:[%s1 + $0x10] sm:$0xf]
    %v24 = vld [vmem:[%s1 + $0x14] sm:$0xf]
    %v25 = vld [vmem:[%s1 + $0x18] sm:$0xf]
    %v26 = vld [vmem:[%s1 + $0x1c] sm:$0xf]
    %v27 = vld [vmem:[%s1 + $0x20] sm:$0xf]
    %v28 = vld [vmem:[%s1 + $0x24] sm:$0xf]
    %v29 = vld [vmem:[%s1 + $0x28] sm:$0xf]
    %v30 = vld [vmem:[%s1 + $0x2c] sm:$0xf]
    %v31 = vld [vmem:[%s1 + $0x30] sm:$0xf]
    %v32 = vld [vmem:[%s1 + $0x34] sm:$0xf]
    %v33 = vld [vmem:[%s1 + $0x38] sm:$0xf]
    %v34 = vld [vmem:[%s1 + $0x3c] sm:$0xf]
    %v51 = vunpack.c.l.b16 %v19
    %v52 = vunpack.c.l.b16 %v20
    %v53 = vunpack.c.l.b16 %v21
    %v54 = vunpack.c.l.b16 %v22
    %v55 = vunpack.c.l.b16 %v23
    %v56 = vunpack.c.l.b16 %v24
    %v57 = vunpack.c.l.b16 %v25
    %v58 = vunpack.c.l.b16 %v26
    %v59 = vunpack.c.l.b16 %v27
    %v60 = vunpack.c.l.b16 %v28
    %v61 = vunpack.c.l.b16 %v29
    %v62 = vunpack.c.l.b16 %v30
    %v63 = vunpack.c.l.b16 %v31
    %v64 = vunpack.c.l.b16 %v32
    %v65 = vunpack.c.l.b16 %v33
    %v66 = vunpack.c.l.b16 %v34
    %v67 = vpack.c.b16 %v52, %v51
    %v68 = vpack.c.b16 %v54, %v53
    %v69 = vpack.c.b16 %v56, %v55
    %v70 = vpack.c.b16 %v58, %v57
    %v71 = vpack.c.b16 %v60, %v59
    %v72 = vpack.c.b16 %v62, %v61
    %v73 = vpack.c.b16 %v64, %v63
    %v74 = vpack.c.b16 %v66, %v65
    %83 = vmatprep.subr.bf16.mxu0 0
    %84 = vmatpush1.bf16.msra.mxu0 %v67
    %85 = vmatprep.subr.bf16.mxu0 0
    %86 = vmatpush1.bf16.msra.mxu0 %v68
    %87 = vmatprep.subr.bf16.mxu0 0
    %88 = vmatpush1.bf16.msra.mxu0 %v69
    %89 = vmatprep.subr.bf16.mxu0 0
    %90 = vmatpush1.bf16.msra.mxu0 %v70
    %91 = vmatprep.subr.bf16.mxu0 0
    %92 = vmatpush1.bf16.msra.mxu0 %v71
    %93 = vmatprep.subr.bf16.mxu0 0
    %94 = vmatpush1.bf16.msra.mxu0 %v72
    %95 = vmatprep.subr.bf16.mxu0 0
    %96 = vmatpush1.bf16.msra.mxu0 %v73
    %97 = vmatprep.subr.bf16.mxu0 0
    %98 = vmatpush1.bf16.msra.mxu0 %v74
    %99 = vmatprep.subr.bf16.mxu0 0
    %100 = vmatpush1.bf16.msra.mxu0 0
    %101 = vmatprep.subr.bf16.mxu0 0
    %102 = vmatpush1.bf16.msra.mxu0 0
    %103 = vmatprep.subr.bf16.mxu0 0
    %104 = vmatpush1.bf16.msra.mxu0 0
    %105 = vmatprep.subr.bf16.mxu0 0
    %106 = vmatpush1.bf16.msra.mxu0 0
    %107 = vmatprep.subr.bf16.mxu0 0
    %108 = vmatpush1.bf16.msra.mxu0 0
    %109 = vmatprep.subr.bf16.mxu0 0
    %110 = vmatpush1.bf16.msra.mxu0 0
    %111 = vmatprep.subr.bf16.mxu0 0
    %112 = vmatpush1.bf16.msra.mxu0 0
    %113 = vmatprep.subr.bf16.mxu0 0
    %114 = vmatpush1.bf16.msra.mxu0 0
    %115 = vmatprep.mubr.bf16.mxu0 0
    %116 = vmatmul.mubr.bf16.gmra.mrb[0].mxu0 %v18
    %v117 = vpop.f32.mrb[0].mxu0
    %v118 = vadd.f32 0.0, %v117
    %v119 = vpop.f32.mrb[0].mxu0
    %v120 = vpop.f32.mrb[0].mxu0
    %v121 = vadd.f32 0.0, %v120
    %v122 = vpop.f32.mrb[0].mxu0
    %123 = vdwg.mxu0
    %v124 = vpack.c.bf16 %v121, %v118
    %v125 = vld [vmem:[%s2] sm:$0xf]
    %vm126 = vcmask 64512
    %v128 = vsel %vm126, %v124, 0
    %vm130 = vcmask 1043456
    %v132 = vsel %vm130, %v125, 0
    %134 = vmatprep.subr.bf16.mxu0 0
    %135 = vmatpush1.bf16.msra.mxu0 %v132
    %136 = vmatprep.subr.bf16.mxu0 0
    %137 = vmatpush1.bf16.msra.mxu0 0
    %138 = vmatprep.subr.bf16.mxu0 0
    %139 = vmatpush1.bf16.msra.mxu0 0
    %140 = vmatprep.subr.bf16.mxu0 0
    %141 = vmatpush1.bf16.msra.mxu0 0
    %142 = vmatprep.subr.bf16.mxu0 0
    %143 = vmatpush1.bf16.msra.mxu0 0
    %144 = vmatprep.subr.bf16.mxu0 0
    %145 = vmatpush1.bf16.msra.mxu0 0
    %146 = vmatprep.subr.bf16.mxu0 0
    %147 = vmatpush1.bf16.msra.mxu0 0
    %148 = vmatprep.subr.bf16.mxu0 0
    %149 = vmatpush1.bf16.msra.mxu0 0
    %150 = vmatprep.subr.bf16.mxu0 0
    %151 = vmatpush1.bf16.msra.mxu0 0
    %152 = vmatprep.subr.bf16.mxu0 0
    %153 = vmatpush1.bf16.msra.mxu0 0
    %154 = vmatprep.subr.bf16.mxu0 0
    %155 = vmatpush1.bf16.msra.mxu0 0
    %156 = vmatprep.subr.bf16.mxu0 0
    %157 = vmatpush1.bf16.msra.mxu0 0
    %158 = vmatprep.subr.bf16.mxu0 0
    %159 = vmatpush1.bf16.msra.mxu0 0
    %160 = vmatprep.subr.bf16.mxu0 0
    %161 = vmatpush1.bf16.msra.mxu0 0
    %162 = vmatprep.subr.bf16.mxu0 0
    %163 = vmatpush1.bf16.msra.mxu0 0
    %164 = vmatprep.subr.bf16.mxu0 0
    %165 = vmatpush1.bf16.msra.mxu0 0
    %166 = vmatprep.mubr.bf16.mxu0 0
    %167 = vmatmul.mubr.bf16.gmra.mrb[0].mxu0 %v128
    %v168 = vpop.f32.mrb[0].mxu0
    %v169 = vadd.f32 0.0, %v168
    %v170 = vpop.f32.mrb[0].mxu0
    %v171 = vpop.f32.mrb[0].mxu0
    %v172 = vadd.f32 0.0, %v171
    %v173 = vpop.f32.mrb[0].mxu0
    %174 = vdwg.mxu0
    %175 = vst [vmem:[#allocation2] sm:$0xff] %v169
    %176 = vst [vmem:[#allocation2 + $0x8] sm:$0xff] %v172
    // Predicated region
    $region14: #{tpu_custom_call.1} parent=1 // pred_check
      _
    $region15: #{tpu_custom_call.1} parent=1 // pred_check_branch
      %178 = sbr.rel (0) target = $region17
    $region16: #{tpu_custom_call.1} parent=1 // pred_region
      %s180 = ssub.s32 256, 256
      %181 = vsyncadd [#allocation3], %s180
      %s182 = sshll.u32 [#allocation2], 4
      %s183 = int_to_ptr.vmem [resolvable:$true] %s182
      %188 = dma.vmem_to_hbm [thread:$0]  %s183, 256, %s3, [#allocation3], 128, 128, 8
    $region17: #{tpu_custom_call.1} parent=1 // pred_fallthru
      _
    // Predicated region
    $region18: #{tpu_custom_call.1} parent=1 // pred_check
      _
    $region19: #{tpu_custom_call.1} parent=1 // pred_check_branch
      %190 = sbr.rel (0) target = $region21
    $region20: #{tpu_custom_call.1} parent=1 // pred_region
      %191 = dma.done [#allocation3], 256
    $region21: #{tpu_custom_call.1} parent=1 // pred_fallthru
      _
    %192 = vsyncpa [#allocation3], 1

</llo_original>
